<compile_context>
chip_gen: v7x
topology: tpu7x:2x2x1
jax: 0.10.0
libtpu: 0.0.40
codegen_flags: <defaults>
</compile_context>

<pallas_src>
import functools

import jax
import jax.numpy as jnp
from jax import lax
from jax.experimental import pallas as pl
from jax.experimental.pallas import tpu as pltpu

EPS = 1e-8  # F.cosine_similarity default eps


# ----------------------------------------------------------------------------
# Fused Pallas kernel: clamp + (folded) ImageNet-norm + (folded) 1x1-conv
# feature projection + per-pixel cosine similarity + per-lane accumulation.
# ----------------------------------------------------------------------------
def _reward_kernel(coef_ref, v_ref, r_ref, out_ref, acc_ref, *,
                   hw, block_rows, sub, n_inner, n_full, need_mask):
    o = pl.program_id(1)          # row super-block axis (parallel)
    i = pl.program_id(2)          # reduction axis (arbitrary)

    @pl.when(i == 0)
    def _():
        acc_ref[...] = jnp.zeros_like(acc_ref)

    # Cholesky-folded projection coefficients (SMEM scalars):
    #   fa = x @ W' + b  with W' = W/std[:,None], b = -(mean/std) @ W
    #   G = W'W'^T = L L^T, p = L^{-1} (W' b), c0' = b.b - p.p
    #   => fa.fb = vA.vB + c0', ||fa||^2 = vA.vA + c0', with vA = L^T a + p.
    l00 = coef_ref[0]
    l10 = coef_ref[1]
    l11 = coef_ref[2]
    l20 = coef_ref[3]
    l21 = coef_ref[4]
    l22 = coef_ref[5]
    p0 = coef_ref[6]
    p1 = coef_ref[7]
    p2 = coef_ref[8]
    c0 = coef_ref[9]

    # Channel-planar blocks (1, 3, R, 128): each channel plane is lane/sublane
    # dense.
    a0 = v_ref[0, 0]
    a1 = v_ref[0, 1]
    a2 = v_ref[0, 2]
    # `rendered_video.clamp(min=0, max=1)` from the PyTorch forward.
    b0 = jnp.clip(r_ref[0, 0], 0.0, 1.0)
    b1 = jnp.clip(r_ref[0, 1], 0.0, 1.0)
    b2 = jnp.clip(r_ref[0, 2], 0.0, 1.0)

    ua0 = l00 * a0 + l10 * a1 + l20 * a2 + p0
    ua1 = l11 * a1 + l21 * a2 + p1
    ua2 = l22 * a2 + p2
    ub0 = l00 * b0 + l10 * b1 + l20 * b2 + p0
    ub1 = l11 * b1 + l21 * b2 + p1
    ub2 = l22 * b2 + p2

    dot_ab = ua0 * ub0 + ua1 * ub1 + ua2 * ub2 + c0
    na2 = ua0 * ua0 + ua1 * ua1 + ua2 * ua2 + c0
    nb2 = ub0 * ub0 + ub1 * ub1 + ub2 * ub2 + c0

    eps2 = EPS * EPS
    # 1/(max(||fa||,eps) * max(||fb||,eps)) via EUP rsqrt on squared norms.
    cos = (dot_ab
           * lax.rsqrt(jnp.maximum(na2, eps2))
           * lax.rsqrt(jnp.maximum(nb2, eps2)))

    if need_mask:
        blk = o * n_inner + i      # row-block index within the current view

        @pl.when(blk < n_full)     # fully valid block: plain VPU accumulate
        def _():
            acc_ref[...] += cos

        @pl.when(blk >= n_full)    # boundary block: mask padding/garbage once
        def _():
            row = lax.broadcasted_iota(jnp.int32, (block_rows, 128), 0)
            lane = lax.broadcasted_iota(jnp.int32, (block_rows, 128), 1)
            pix = (blk * block_rows + row) * 128 + lane
            acc_ref[...] += jnp.where(pix < hw, cos, 0.0)
    else:
        acc_ref[...] += cos

    # Epilogue: fold the accumulator down to a (sub, 128) slab with plain VPU
    # adds (no cross-lane reduce, no masked store); wrapper finishes the sum.
    @pl.when(i == n_inner - 1)
    def _():
        acc = acc_ref[...]
        out_ref[...] = acc.reshape(block_rows // sub, sub, 128).sum(axis=0)[None]


def _reward_coefficients(feat_w, im_mean, im_std):
    """Fold ImageNet normalization + 1x1-conv projection into 10 scalars.

    Returns [L00, L10, L11, L20, L21, L22, p0, p1, p2, c0'] where
    G = W'W'^T = L L^T (Cholesky), p = L^{-1}(W' b), c0' = b.b - p.p.
    """
    hi = lax.Precision.HIGHEST
    w = feat_w / im_std.reshape(3, 1)                                 # W'
    b = -jnp.einsum("c,cf->f", (im_mean / im_std).reshape(3), feat_w,
                    precision=hi)
    g = jnp.einsum("cf,df->cd", w, w, precision=hi)                   # 3x3 Gram
    h = jnp.einsum("cf,f->c", w, b, precision=hi)
    c0 = jnp.einsum("f,f->", b, b, precision=hi)

    # Manual 3x3 Cholesky with a small diagonal jitter (rank-deficiency guard).
    jit = 1e-6 * (jnp.trace(g) / 3.0) + 1e-12
    l00 = jnp.sqrt(g[0, 0] + jit)
    l10 = g[1, 0] / l00
    l20 = g[2, 0] / l00
    l11 = jnp.sqrt(g[1, 1] + jit - l10 * l10)
    l21 = (g[2, 1] - l20 * l10) / l11
    l22 = jnp.sqrt(g[2, 2] + jit - l20 * l20 - l21 * l21)
    p0 = h[0] / l00
    p1 = (h[1] - l10 * p0) / l11
    p2 = (h[2] - l20 * p0 - l21 * p1) / l22
    c0p = c0 - (p0 * p0 + p1 * p1 + p2 * p2)

    coef = jnp.stack([l00, l10, l11, l20, l21, l22, p0, p1, p2, c0p])
    return coef.astype(jnp.float32)


def reward_pallas(video, rendered, coef, *, block_rows=2048, n_outer=1):
    """video / rendered: [V, 3, H, W] float32 (native channel-planar layout).

    n_outer=1 is right for single-TensorCore chips (v5e/v6e); on v7x with a
    single view pass n_outer=2 so both TensorCores get work.
    """
    v, c, h, w = video.shape
    assert c == 3
    hw = h * w
    n = v * hw

    vid = video.reshape(v, 3, hw).astype(jnp.float32)
    ren = rendered.reshape(v, 3, hw).astype(jnp.float32)

    if hw % 128 != 0:
        # TODO(synk): uncommon lane-padding path (one copy); masked in-kernel.
        pad = 128 - hw % 128
        vid = jnp.pad(vid, ((0, 0), (0, 0), (0, pad)))
        ren = jnp.pad(ren, ((0, 0), (0, 0), (0, pad)))
    rows = vid.shape[-1] // 128
    vid = vid.reshape(v, 3, rows, 128)        # copy-free when hw % 128 == 0
    ren = ren.reshape(v, 3, rows, 128)

    # Block sizing: multiple of 8 sublane rows, or the full row extent.
    req = max(8, (int(block_rows) // 8) * 8)
    block_rows = rows if rows <= req else req
    sub = 8 if block_rows % 8 == 0 else block_rows

    n_blocks = -(-rows // block_rows)
    n_outer_eff = n_outer if (n_outer >= 1 and n_blocks % n_outer == 0) else 1
    n_inner = n_blocks // n_outer_eff

    covered = n_outer_eff * n_inner * block_rows * 128   # pixels touched / view
    need_mask = covered != hw
    n_full = hw // (block_rows * 128)                    # fully-valid blocks

    block_bytes = 3 * block_rows * 128 * 4
    vmem_limit = min(48 * 1024 * 1024,
                     4 * block_bytes + block_rows * 128 * 4 + (8 << 20))

    grid_spec = pltpu.PrefetchScalarGridSpec(
        num_scalar_prefetch=0,
        grid=(v, n_outer_eff, n_inner),
        in_specs=[
            pl.BlockSpec(memory_space=pltpu.MemorySpace.SMEM),          # coef
            pl.BlockSpec((1, 3, block_rows, 128),
                         lambda vi, o, i: (vi, 0, o * n_inner + i, 0)),  # video
            pl.BlockSpec((1, 3, block_rows, 128),
                         lambda vi, o, i: (vi, 0, o * n_inner + i, 0)),  # rendered
        ],
        out_specs=pl.BlockSpec((1, sub, 128),
                               lambda vi, o, i: (vi * n_outer_eff + o, 0, 0)),
        scratch_shapes=[pltpu.VMEM((block_rows, 128), jnp.float32)],
    )

    partials = pl.pallas_call(
        functools.partial(_reward_kernel, hw=hw, block_rows=block_rows,
                          sub=sub, n_inner=n_inner, n_full=n_full,
                          need_mask=need_mask),
        out_shape=jax.ShapeDtypeStruct((v * n_outer_eff, sub, 128), jnp.float32),
        grid_spec=grid_spec,
        compiler_params=pltpu.CompilerParams(
            dimension_semantics=("parallel", "parallel", "arbitrary"),
            vmem_limit_bytes=int(vmem_limit)),
    )(coef, vid, ren)

    # .mean().clamp(min=0) over the true pixel count.
    return jnp.maximum(jnp.sum(partials) / n, 0.0)


# ----------------------------------------------------------------------------
# Plain-JAX glue: deterministic stand-ins for GSDecoder / renderer / FeatUp.
# ----------------------------------------------------------------------------
def make_params(key, latent_c=4, gauss_c=14, feat_c=32):
    k1, k2 = jax.random.split(key)
    w_dec = jax.random.normal(k1, (latent_c, gauss_c), jnp.float32) / jnp.sqrt(latent_c)
    b_dec = jnp.zeros((gauss_c,), jnp.float32)
    w_feat = jax.random.normal(k2, (3, feat_c), jnp.float32) / jnp.sqrt(3.0)
    im_mean = jnp.array([[0.485, 0.456, 0.406]], jnp.float32)
    im_std = jnp.array([[0.229, 0.224, 0.225]], jnp.float32)
    return dict(w_dec=w_dec, b_dec=b_dec, w_feat=w_feat,
                im_mean=im_mean, im_std=im_std)


def gs_decoder_standin(latents, params, h, w):
    # TODO(synk): real GSDecoder (checkpointed conv decoder) not translated;
    # stand-in = nearest-neighbor upsample of latents + per-pixel linear head.
    v, cl, hl, wl = latents.shape
    up = jnp.repeat(jnp.repeat(latents, h // hl, axis=2), w // wl, axis=3)
    feat = jnp.transpose(up, (0, 2, 3, 1))                    # [v, h, w, cl]
    raw = feat @ params["w_dec"] + params["b_dec"]            # [v, h, w, 14]

    means = raw[..., 0:3]
    scale = jax.nn.softplus(raw[..., 3:6]) * 0.01
    rot = raw[..., 6:10]
    rot = rot / (jnp.linalg.norm(rot, axis=-1, keepdims=True) + 1e-8)
    opacity = jax.nn.sigmoid(raw[..., 10])
    rgb = jax.nn.sigmoid(raw[..., 11:14])
    gaussians = dict(means=means, scale=scale, rotation=rot,
                     opacity=opacity, rgb=rgb)

    f = 0.8 * w
    Ks = jnp.tile(jnp.array([[f, 0.0, w / 2.0],
                             [0.0, f, h / 2.0],
                             [0.0, 0.0, 1.0]], jnp.float32)[None], (v, 1, 1))
    viewmats = jnp.tile(jnp.eye(4, dtype=jnp.float32)[None], (v, 1, 1))
    return gaussians, Ks, viewmats


def gaussian_renderer_standin(Ks, viewmats, gaussians_grid, image_shape):
    """Mirrors GaussianRenderer.forward(Ks, viewmats, gaussians, image_shape)."""
    del viewmats, image_shape
    v = Ks.shape[0]
    n_channels = gaussians_grid["rgb"].shape[-1]
    bg_color = jnp.zeros((v, n_channels), jnp.float32)    # bg_color.repeat(...)
    # TODO(synk): gsplat `rasterization` (3D projection + depth sort + tiled
    # alpha compositing) has no clean Pallas equivalent; the stand-in composites
    # the per-pixel Gaussian colors over the background with their opacity.
    rgb = gaussians_grid["rgb"]                            # [v, h, w, 3]
    alpha = gaussians_grid["opacity"][..., None]           # [v, h, w, 1]
    out_img = alpha * rgb + (1.0 - alpha) * bg_color[:, None, None, :]
    # rearrange(out_img, 'v h w c -> v c h w') — channel-planar output so the
    # reward kernel consumes it copy-free.
    return jnp.transpose(out_img, (0, 3, 1, 2))


def geometry_reward_forward(latents, video, params):
    v, _, h, w = video.shape
    gaussians, Ks, viewmats = gs_decoder_standin(latents, params, h, w)

    # rearrange(v, 'v h w ... -> (v h w) ...').float()
    gaussians_flat = {k: val.reshape((v * h * w,) + val.shape[3:]).astype(jnp.float32)
                      for k, val in gaussians.items()}

    rendered_video = gaussian_renderer_standin(Ks, viewmats, gaussians, (h, w))

    # TODO(synk): FeatUp/DINO16 upsampler not translated; feature extraction is
    # a deterministic 1x1-conv projection folded (with the ImageNet norm) into
    # the Pallas reward kernel's Cholesky-factored coefficients.
    coef = _reward_coefficients(params["w_feat"], params["im_mean"], params["im_std"])
    reward = reward_pallas(video.astype(jnp.float32), rendered_video, coef)
    return reward, (gaussians_flat, Ks, viewmats)


def _reward_reference(video, rendered, params):
    """Pure-JAX reference for the fused reward kernel (correctness check)."""
    hi = lax.Precision.HIGHEST
    mean = params["im_mean"].reshape(1, 3, 1, 1)
    std = params["im_std"].reshape(1, 3, 1, 1)
    r = jnp.clip(rendered, 0.0, 1.0)
    fa = jnp.einsum("vchw,cf->vfhw", (video - mean) / std, params["w_feat"],
                    precision=hi)
    fb = jnp.einsum("vchw,cf->vfhw", (r - mean) / std, params["w_feat"],
                    precision=hi)
    num = jnp.sum(fa * fb, axis=1)
    den = (jnp.maximum(jnp.linalg.norm(fa, axis=1), EPS)
           * jnp.maximum(jnp.linalg.norm(fb, axis=1), EPS))
    return jnp.maximum(jnp.mean(num / den), 0.0)


# ----------------------------------------------------------------------------
if __name__ == "__main__":
    key = jax.random.PRNGKey(0)
    k_lat, k_vid, k_par = jax.random.split(key, 3)

    V, H, W = 2, 16, 16
    latents = jax.random.normal(k_lat, (V, 4, 4, 4), jnp.float32)
    video = jax.random.uniform(k_vid, (V, 3, H, W), jnp.float32)

    params = make_params(k_par)

    reward, (gaussians, Ks, viewmats) = geometry_reward_forward(latents, video, params)
    jax.block_until_ready(reward)
    jax.block_until_ready(gaussians["means"])

    assert reward.shape == ()
    assert float(reward) >= 0.0
    assert gaussians["means"].shape == (V * H * W, 3)
    assert Ks.shape == (V, 3, 3) and viewmats.shape == (V, 4, 4)

    # Standalone correctness check of the fused kernel vs. a pure-JAX reference
    # (exercises the rendered-image clamp via out-of-range values).
    k1, k2 = jax.random.split(jax.random.PRNGKey(1))
    va = jax.random.uniform(k1, (V, 3, H, W), jnp.float32)
    vb = jax.random.uniform(k2, (V, 3, H, W), jnp.float32) * 1.4 - 0.2
    coef = _reward_coefficients(params["w_feat"], params["im_mean"], params["im_std"])
    got = float(jax.block_until_ready(reward_pallas(va, vb, coef)))
    want = float(_reward_reference(va, vb, params))
    assert abs(got - want) < 1e-3, (got, want)

    print("KERNEL_OK")
</pallas_src>

<mosaic_0001>
module attributes {stable_mosaic.version = 11 : i64} {
  func.func @_reward_kernel(%arg0: i32, %arg1: i32, %arg2: i32, %arg3: memref<10xf32, #tpu.memory_space<smem>>, %arg4: memref<1x3x2x128xf32, #tpu.memory_space<vmem>>, %arg5: memref<1x3x2x128xf32, #tpu.memory_space<vmem>>, %arg6: memref<1x2x128xf32, #tpu.memory_space<vmem>>, %arg7: memref<2x128xf32, #tpu.memory_space<vmem>>) attributes {dimension_semantics = [#tpu.dimension_semantics<parallel>, #tpu.dimension_semantics<parallel>, #tpu.dimension_semantics<arbitrary>], iteration_bounds = array<i64: 2, 1, 1>, scalar_prefetch = 0 : i64, scratch_operands = 1 : i64, tpu.core_type = #tpu.core_type<tc>, window_params = [{transform_indices = @transform_0, window_bounds = array<i64: 10>}, {transform_indices = @transform_1, window_bounds = array<i64: 1, 3, 2, 128>}, {transform_indices = @transform_2, window_bounds = array<i64: 1, 3, 2, 128>}, {transform_indices = @transform_3, window_bounds = array<i64: 1, 2, 128>}]} {
    %c0_i32 = arith.constant 0 : i32
    %0 = arith.cmpi eq, %arg2, %c0_i32 : i32
    %1 = arith.extui %0 : i1 to i32
    %c0_i32_0 = arith.constant 0 : i32
    %2 = arith.cmpi ne, %1, %c0_i32_0 : i32
    scf.if %2 {
      %cst_38 = arith.constant 0.000000e+00 : f32
      %114 = vector.broadcast %cst_38 : f32 to vector<2x128xf32>
      %c0_39 = arith.constant 0 : index
      %c0_40 = arith.constant 0 : index
      %115 = vector.load %arg7[%c0_39, %c0_40] : memref<2x128xf32, #tpu.memory_space<vmem>>, vector<2x128xf32>
      tpu.vector_store %arg7[%c0_39, %c0_40], %114 {strides = array<i32>} : memref<2x128xf32, #tpu.memory_space<vmem>>, vector<2x128xf32>,
    } else {
    }
    %c0 = arith.constant 0 : index
    %3 = memref.load %arg3[%c0] : memref<10xf32, #tpu.memory_space<smem>>
    %c1 = arith.constant 1 : index
    %4 = memref.load %arg3[%c1] : memref<10xf32, #tpu.memory_space<smem>>
    %c2 = arith.constant 2 : index
    %5 = memref.load %arg3[%c2] : memref<10xf32, #tpu.memory_space<smem>>
    %c3 = arith.constant 3 : index
    %6 = memref.load %arg3[%c3] : memref<10xf32, #tpu.memory_space<smem>>
    %c4 = arith.constant 4 : index
    %7 = memref.load %arg3[%c4] : memref<10xf32, #tpu.memory_space<smem>>
    %c5 = arith.constant 5 : index
    %8 = memref.load %arg3[%c5] : memref<10xf32, #tpu.memory_space<smem>>
    %c6 = arith.constant 6 : index
    %9 = memref.load %arg3[%c6] : memref<10xf32, #tpu.memory_space<smem>>
    %c7 = arith.constant 7 : index
    %10 = memref.load %arg3[%c7] : memref<10xf32, #tpu.memory_space<smem>>
    %c8 = arith.constant 8 : index
    %11 = memref.load %arg3[%c8] : memref<10xf32, #tpu.memory_space<smem>>
    %c9 = arith.constant 9 : index
    %12 = memref.load %arg3[%c9] : memref<10xf32, #tpu.memory_space<smem>>
    %c0_1 = arith.constant 0 : index
    %c0_2 = arith.constant 0 : index
    %c0_3 = arith.constant 0 : index
    %c0_4 = arith.constant 0 : index
    %13 = vector.load %arg4[%c0_1, %c0_2, %c0_3, %c0_4] : memref<1x3x2x128xf32, #tpu.memory_space<vmem>>, vector<1x1x2x128xf32>
    %14 = vector.shape_cast %13 : vector<1x1x2x128xf32> to vector<2x128xf32>
    %c0_5 = arith.constant 0 : index
    %c1_6 = arith.constant 1 : index
    %c0_7 = arith.constant 0 : index
    %c0_8 = arith.constant 0 : index
    %15 = vector.load %arg4[%c0_5, %c1_6, %c0_7, %c0_8] : memref<1x3x2x128xf32, #tpu.memory_space<vmem>>, vector<1x1x2x128xf32>
    %16 = vector.shape_cast %15 : vector<1x1x2x128xf32> to vector<2x128xf32>
    %c0_9 = arith.constant 0 : index
    %c2_10 = arith.constant 2 : index
    %c0_11 = arith.constant 0 : index
    %c0_12 = arith.constant 0 : index
    %17 = vector.load %arg4[%c0_9, %c2_10, %c0_11, %c0_12] : memref<1x3x2x128xf32, #tpu.memory_space<vmem>>, vector<1x1x2x128xf32>
    %18 = vector.shape_cast %17 : vector<1x1x2x128xf32> to vector<2x128xf32>
    %c0_13 = arith.constant 0 : index
    %c0_14 = arith.constant 0 : index
    %c0_15 = arith.constant 0 : index
    %c0_16 = arith.constant 0 : index
    %19 = vector.load %arg5[%c0_13, %c0_14, %c0_15, %c0_16] : memref<1x3x2x128xf32, #tpu.memory_space<vmem>>, vector<1x1x2x128xf32>
    %20 = vector.shape_cast %19 : vector<1x1x2x128xf32> to vector<2x128xf32>
    %cst = arith.constant 0.000000e+00 : f32
    %cst_17 = arith.constant 1.000000e+00 : f32
    %21 = vector.broadcast %cst : f32 to vector<2x128xf32>
    %22 = arith.maximumf %21, %20 : vector<2x128xf32>
    %23 = vector.broadcast %cst_17 : f32 to vector<2x128xf32>
    %24 = arith.minimumf %23, %22 : vector<2x128xf32>
    %c0_18 = arith.constant 0 : index
    %c1_19 = arith.constant 1 : index
    %c0_20 = arith.constant 0 : index
    %c0_21 = arith.constant 0 : index
    %25 = vector.load %arg5[%c0_18, %c1_19, %c0_20, %c0_21] : memref<1x3x2x128xf32, #tpu.memory_space<vmem>>, vector<1x1x2x128xf32>
    %26 = vector.shape_cast %25 : vector<1x1x2x128xf32> to vector<2x128xf32>
    %cst_22 = arith.constant 0.000000e+00 : f32
    %cst_23 = arith.constant 1.000000e+00 : f32
    %27 = vector.broadcast %cst_22 : f32 to vector<2x128xf32>
    %28 = arith.maximumf %27, %26 : vector<2x128xf32>
    %29 = vector.broadcast %cst_23 : f32 to vector<2x128xf32>
    %30 = arith.minimumf %29, %28 : vector<2x128xf32>
    %c0_24 = arith.constant 0 : index
    %c2_25 = arith.constant 2 : index
    %c0_26 = arith.constant 0 : index
    %c0_27 = arith.constant 0 : index
    %31 = vector.load %arg5[%c0_24, %c2_25, %c0_26, %c0_27] : memref<1x3x2x128xf32, #tpu.memory_space<vmem>>, vector<1x1x2x128xf32>
    %32 = vector.shape_cast %31 : vector<1x1x2x128xf32> to vector<2x128xf32>
    %cst_28 = arith.constant 0.000000e+00 : f32
    %cst_29 = arith.constant 1.000000e+00 : f32
    %33 = vector.broadcast %cst_28 : f32 to vector<2x128xf32>
    %34 = arith.maximumf %33, %32 : vector<2x128xf32>
    %35 = vector.broadcast %cst_29 : f32 to vector<2x128xf32>
    %36 = arith.minimumf %35, %34 : vector<2x128xf32>
    %37 = vector.broadcast %3 : f32 to vector<2x128xf32>
    %38 = arith.mulf %37, %14 : vector<2x128xf32>
    %39 = vector.broadcast %4 : f32 to vector<2x128xf32>
    %40 = arith.mulf %39, %16 : vector<2x128xf32>
    %41 = arith.addf %38, %40 : vector<2x128xf32>
    %42 = vector.broadcast %6 : f32 to vector<2x128xf32>
    %43 = arith.mulf %42, %18 : vector<2x128xf32>
    %44 = arith.addf %41, %43 : vector<2x128xf32>
    %45 = vector.broadcast %9 : f32 to vector<2x128xf32>
    %46 = arith.addf %44, %45 : vector<2x128xf32>
    %47 = vector.broadcast %5 : f32 to vector<2x128xf32>
    %48 = arith.mulf %47, %16 : vector<2x128xf32>
    %49 = vector.broadcast %7 : f32 to vector<2x128xf32>
    %50 = arith.mulf %49, %18 : vector<2x128xf32>
    %51 = arith.addf %48, %50 : vector<2x128xf32>
    %52 = vector.broadcast %10 : f32 to vector<2x128xf32>
    %53 = arith.addf %51, %52 : vector<2x128xf32>
    %54 = vector.broadcast %8 : f32 to vector<2x128xf32>
    %55 = arith.mulf %54, %18 : vector<2x128xf32>
    %56 = vector.broadcast %11 : f32 to vector<2x128xf32>
    %57 = arith.addf %55, %56 : vector<2x128xf32>
    %58 = vector.broadcast %3 : f32 to vector<2x128xf32>
    %59 = arith.mulf %58, %24 : vector<2x128xf32>
    %60 = vector.broadcast %4 : f32 to vector<2x128xf32>
    %61 = arith.mulf %60, %30 : vector<2x128xf32>
    %62 = arith.addf %59, %61 : vector<2x128xf32>
    %63 = vector.broadcast %6 : f32 to vector<2x128xf32>
    %64 = arith.mulf %63, %36 : vector<2x128xf32>
    %65 = arith.addf %62, %64 : vector<2x128xf32>
    %66 = vector.broadcast %9 : f32 to vector<2x128xf32>
    %67 = arith.addf %65, %66 : vector<2x128xf32>
    %68 = vector.broadcast %5 : f32 to vector<2x128xf32>
    %69 = arith.mulf %68, %30 : vector<2x128xf32>
    %70 = vector.broadcast %7 : f32 to vector<2x128xf32>
    %71 = arith.mulf %70, %36 : vector<2x128xf32>
    %72 = arith.addf %69, %71 : vector<2x128xf32>
    %73 = vector.broadcast %10 : f32 to vector<2x128xf32>
    %74 = arith.addf %72, %73 : vector<2x128xf32>
    %75 = vector.broadcast %8 : f32 to vector<2x128xf32>
    %76 = arith.mulf %75, %36 : vector<2x128xf32>
    %77 = vector.broadcast %11 : f32 to vector<2x128xf32>
    %78 = arith.addf %76, %77 : vector<2x128xf32>
    %79 = arith.mulf %46, %67 : vector<2x128xf32>
    %80 = arith.mulf %53, %74 : vector<2x128xf32>
    %81 = arith.addf %79, %80 : vector<2x128xf32>
    %82 = arith.mulf %57, %78 : vector<2x128xf32>
    %83 = arith.addf %81, %82 : vector<2x128xf32>
    %84 = vector.broadcast %12 : f32 to vector<2x128xf32>
    %85 = arith.addf %83, %84 : vector<2x128xf32>
    %86 = arith.mulf %46, %46 : vector<2x128xf32>
    %87 = arith.mulf %53, %53 : vector<2x128xf32>
    %88 = arith.addf %86, %87 : vector<2x128xf32>
    %89 = arith.mulf %57, %57 : vector<2x128xf32>
    %90 = arith.addf %88, %89 : vector<2x128xf32>
    %91 = vector.broadcast %12 : f32 to vector<2x128xf32>
    %92 = arith.addf %90, %91 : vector<2x128xf32>
    %93 = arith.mulf %67, %67 : vector<2x128xf32>
    %94 = arith.mulf %74, %74 : vector<2x128xf32>
    %95 = arith.addf %93, %94 : vector<2x128xf32>
    %96 = arith.mulf %78, %78 : vector<2x128xf32>
    %97 = arith.addf %95, %96 : vector<2x128xf32>
    %98 = vector.broadcast %12 : f32 to vector<2x128xf32>
    %99 = arith.addf %97, %98 : vector<2x128xf32>
    %cst_30 = arith.constant 1.000000e-16 : f32
    %100 = vector.broadcast %cst_30 : f32 to vector<2x128xf32>
    %101 = arith.maximumf %92, %100 : vector<2x128xf32>
    %102 = math.rsqrt %101 : vector<2x128xf32>
    %103 = arith.mulf %85, %102 : vector<2x128xf32>
    %cst_31 = arith.constant 1.000000e-16 : f32
    %104 = vector.broadcast %cst_31 : f32 to vector<2x128xf32>
    %105 = arith.maximumf %99, %104 : vector<2x128xf32>
    %106 = math.rsqrt %105 : vector<2x128xf32>
    %107 = arith.mulf %103, %106 : vector<2x128xf32>
    %c0_32 = arith.constant 0 : index
    %c0_33 = arith.constant 0 : index
    %108 = vector.load %arg7[%c0_32, %c0_33] : memref<2x128xf32, #tpu.memory_space<vmem>>, vector<2x128xf32>
    %109 = arith.addf %108, %107 : vector<2x128xf32>
    %c0_34 = arith.constant 0 : index
    %c0_35 = arith.constant 0 : index
    %110 = vector.load %arg7[%c0_34, %c0_35] : memref<2x128xf32, #tpu.memory_space<vmem>>, vector<2x128xf32>
    tpu.vector_store %arg7[%c0_34, %c0_35], %109 {strides = array<i32>} : memref<2x128xf32, #tpu.memory_space<vmem>>, vector<2x128xf32>,
    %c0_i32_36 = arith.constant 0 : i32
    %111 = arith.cmpi eq, %arg2, %c0_i32_36 : i32
    %112 = arith.extui %111 : i1 to i32
    %c0_i32_37 = arith.constant 0 : i32
    %113 = arith.cmpi ne, %112, %c0_i32_37 : i32
    scf.if %113 {
      %c0_38 = arith.constant 0 : index
      %c0_39 = arith.constant 0 : index
      %114 = vector.load %arg7[%c0_38, %c0_39] : memref<2x128xf32, #tpu.memory_space<vmem>>, vector<2x128xf32>
      %115 = vector.shape_cast %114 : vector<2x128xf32> to vector<1x2x128xf32>
      %cst_40 = arith.constant dense<0.000000e+00> : vector<2x128xf32>
      %116 = vector.multi_reduction <add>, %115, %cst_40 [0] : vector<1x2x128xf32> to vector<2x128xf32>
      %117 = vector.shape_cast %116 : vector<2x128xf32> to vector<1x2x128xf32>
      %c0_41 = arith.constant 0 : index
      %c0_42 = arith.constant 0 : index
      %c0_43 = arith.constant 0 : index
      %118 = vector.load %arg6[%c0_41, %c0_42, %c0_43] : memref<1x2x128xf32, #tpu.memory_space<vmem>>, vector<1x2x128xf32>
      tpu.vector_store %arg6[%c0_41, %c0_42, %c0_43], %117 {strides = array<i32>} : memref<1x2x128xf32, #tpu.memory_space<vmem>>, vector<1x2x128xf32>,
    } else {
    }
    return
  }
  func.func @transform_0(%arg0: i32, %arg1: i32, %arg2: i32) -> i32 {
    %c0_i32 = arith.constant 0 : i32
    %c0_i32_0 = arith.constant 0 : i32
    return %c0_i32 : i32
  }
  func.func @transform_1(%arg0: i32, %arg1: i32, %arg2: i32) -> (i32, i32, i32, i32) {
    %c1_i32 = arith.constant 1 : i32
    %0 = arith.muli %arg1, %c1_i32 : i32
    %1 = arith.addi %0, %arg2 : i32
    %c0_i32 = arith.constant 0 : i32
    %c0_i32_0 = arith.constant 0 : i32
    %c0_i32_1 = arith.constant 0 : i32
    return %arg0, %c0_i32, %1, %c0_i32_0 : i32, i32, i32, i32
  }
  func.func @transform_2(%arg0: i32, %arg1: i32, %arg2: i32) -> (i32, i32, i32, i32) {
    %c1_i32 = arith.constant 1 : i32
    %0 = arith.muli %arg1, %c1_i32 : i32
    %1 = arith.addi %0, %arg2 : i32
    %c0_i32 = arith.constant 0 : i32
    %c0_i32_0 = arith.constant 0 : i32
    %c0_i32_1 = arith.constant 0 : i32
    return %arg0, %c0_i32, %1, %c0_i32_0 : i32, i32, i32, i32
  }
  func.func @transform_3(%arg0: i32, %arg1: i32, %arg2: i32) -> (i32, i32, i32) {
    %c1_i32 = arith.constant 1 : i32
    %0 = arith.muli %arg0, %c1_i32 : i32
    %1 = arith.addi %0, %arg1 : i32
    %c0_i32 = arith.constant 0 : i32
    %c0_i32_0 = arith.constant 0 : i32
    %c0_i32_1 = arith.constant 0 : i32
    return %1, %c0_i32, %c0_i32_0 : i32, i32, i32
  }
}

</mosaic_0001>

<llo_original>
// kernel: tpu_custom_call.1
$region0: #{tpu_custom_call.1}
  #allocation0 [shape = 'u32[]', space=smem, size = 0x4, offset = 0x4, fixed_abs, tag = 'smem constant byte address 0x4 - core index']
  #allocation1 [shape = 'u32[144,128]{1,0:T(1,128)}', space=vmem, size = 0x12000, scoped, tag = 'internal scratch']
  #allocation2 [shape = 'f32[2,128]{1,0:T(2,128)}', space=vmem, size = 0x400, scoped, tag = 'scratch operand']
  %s0 = inlined_call_operand.hbm [shape: f32[10], index: 0, kind: input, shape index: {}]
  %s1 = inlined_call_operand.hbm [shape: f32[2,3,2,128], index: 1, kind: input, shape index: {}]
  %s2 = inlined_call_operand.hbm [shape: f32[2,3,2,128], index: 2, kind: input, shape index: {}]
  %s3 = inlined_call_operand.hbm [shape: f32[2,2,128], index: 3, kind: output, shape index: {}]
  %s4 = sld [smem:[#allocation0]]
  $region65: #{tpu_custom_call.1} parent=0
    _
  %s6 = ssub.s32 1, %s4
  %s7 = scalar_select 0, %s6, %s4
  $region1: #{tpu_custom_call.1} parent=0
    #allocation3 [shape = 'u8[512]{0}', space=smem, size = 0x200, scoped, tag = 'input window, operand 0, single buffered']
    #allocation4 [shape = 's32[2]{0}', space=sflag, size = 0x8, scoped, tag = 'scoped memory for tpu_custom_call.1']
    #allocation5 [shape = 's32[2]{0}', space=sflag, size = 0x8, scoped, tag = 'scoped memory for tpu_custom_call.1']
    #allocation6 [shape = 's32[2]{0}', space=sflag, size = 0x8, scoped, tag = 'scoped memory for tpu_custom_call.1']
    #allocation7 [shape = 'u8[6144]{0}', space=vmem, size = 0x1800, scoped, tag = 'input window, operand 1']
    #allocation8 [shape = 'u8[6144]{0}', space=vmem, size = 0x1800, scoped, tag = 'input window, operand 2']
    #allocation9 [shape = 's32[2]{0}', space=sflag, size = 0x8, scoped, tag = 'scoped memory for tpu_custom_call.1']
    #allocation10 [shape = 'u8[2048]{0}', space=vmem, size = 0x800, scoped, tag = 'output window, operand 0']
    %8 = vsyncpa [#allocation6], 0
    %9 = vsyncpa [#allocation4], 0
    %s10 = scalar_lea.sflag [#allocation4], 1
    %11 = vsyncpa %s10, 0
    %12 = vsyncpa [#allocation9], 0
    %s13 = scalar_lea.sflag [#allocation9], 1
    %14 = vsyncpa %s13, 0
    %15 = vsyncpa [#allocation5], 0
    %s16 = scalar_lea.sflag [#allocation5], 1
    %17 = vsyncpa %s16, 0
    loop: start=0, step=1, limit=4
    $region2: #{tpu_custom_call.1} parent=1 // loop_pre_header
      _
    $region3: #{tpu_custom_call.1} parent=1 // loop_header
      %s19 = sphi 0, %s23
      %p20 = scmp.ge.s32.totalorder %s19, 4
      %s26 = sphi 0, %s45
      %s27 = sphi 0, %s41
      %s28 = sphi 0, %s37
      %s29 = sphi 0, %s26
      %s30 = sphi 0, %s27
      %s31 = sphi 0, %s28
      %s32 = sphi 0, %s29
      %s33 = sphi 0, %s30
      %s34 = sphi 0, %s31
      %s46 = sphi 0, %s46
      %s48 = sphi 0, %s46
      %s49 = sphi 0, %s48
      %s63 = sphi 0, %s49
      %s73 = sphi 0, %s75
      %s76 = sphi 0, %s73
      %s77 = sphi 0, %s76
      %s93 = sphi 0, %s77
      %s103 = sphi 0, %s105
      %s106 = sphi 0, %s103
      %s107 = sphi 0, %s106
      %s123 = sphi 0, %s107
      %s131 = sphi 0, %s133
      %s134 = sphi 0, %s131
      %s135 = sphi 0, %s134
      %s151 = sphi 0, %s135
    $region4: #{tpu_custom_call.1} parent=1 // loop_header_branch
      %22 = sbr.rel (%p20) target = $region8
    $region5: #{tpu_custom_call.1} parent=1 // loop_body
      %s24 = ssub.s32 %s19, 1
      %s25 = ssub.s32 %s19, 2
      %s35 = sadd.s32 1, %s28
      %p36 = scmp.ge.s32.totalorder %s35, 1
      %s37 = scalar_select %p36, 0, %s35
      %s38 = sadd.s32 1, %s27
      %s39 = scalar_select %p36, %s38, %s27
      %p40 = scmp.ge.s32.totalorder %s39, 1
      %s41 = scalar_select %p40, 0, %s39
      %s42 = sadd.s32 1, %s26
      %s43 = scalar_select %p40, %s42, %s26
      %p44 = scmp.ge.s32.totalorder %s43, 2
      %s45 = scalar_select %p44, 0, %s43
      %s47 = sadd.s32 %s46, 1
      %p50 = scmp.eq.s32.totalorder %s19, 1
      %p51 = scmp.ne.s32.totalorder %s46, %s48
      %p52 = scmp.eq.s32.totalorder %s19, 0
      %p53 = por %p51, %p52
      %p54 = scmp.ne.s32.totalorder %s46, %s48
      %p55 = scmp.eq.s32.totalorder %s24, 1
      %p56 = por %p54, %p55
      %p57 = scmp.ne.s32.totalorder %s48, %s49
      %p58 = scmp.eq.s32.totalorder %s24, 0
      %p59 = por %p57, %p58
      %p60 = scmp.ne.s32.totalorder %s48, %s49
      %p61 = scmp.eq.s32.totalorder %s25, 1
      %p62 = por %p60, %p61
      %p64 = scmp.ne.s32.totalorder %s49, %s63
      %p65 = scmp.eq.s32.totalorder %s25, 0
      %p66 = por %p64, %p65
      %s67 = sadd.s32 %s27, %s28
      %s68 = sadd.s32 %s41, %s37
      %s69 = ssub.s32 %s26, %s45
      %s70 = ssub.s32 %s67, %s68
      %s71 = sor.u32 %s69, %s70
      %p72 = scmp.eq.s32.totalorder %s71, 0
      %s74 = sadd.s32 %s73, 1
      %s75 = scalar_select %p72, %s73, %s74
      %p78 = pneg %p72
      %p79 = scmp.eq.s32.totalorder %s19, 1
      %p80 = por %p78, %p79
      %p81 = scmp.ne.s32.totalorder %s73, %s76
      %p82 = scmp.eq.s32.totalorder %s19, 0
      %p83 = por %p81, %p82
      %p84 = scmp.ne.s32.totalorder %s73, %s76
      %p85 = scmp.eq.s32.totalorder %s24, 1
      %p86 = por %p84, %p85
      %p87 = scmp.ne.s32.totalorder %s76, %s77
      %p88 = scmp.eq.s32.totalorder %s24, 0
      %p89 = por %p87, %p88
      %p90 = scmp.ne.s32.totalorder %s76, %s77
      %p91 = scmp.eq.s32.totalorder %s25, 1
      %p92 = por %p90, %p91
      %p94 = scmp.ne.s32.totalorder %s77, %s93
      %p95 = scmp.eq.s32.totalorder %s25, 0
      %p96 = por %p94, %p95
      %s97 = sadd.s32 %s27, %s28
      %s98 = sadd.s32 %s41, %s37
      %s99 = ssub.s32 %s26, %s45
      %s100 = ssub.s32 %s97, %s98
      %s101 = sor.u32 %s99, %s100
      %p102 = scmp.eq.s32.totalorder %s101, 0
      %s104 = sadd.s32 %s103, 1
      %s105 = scalar_select %p102, %s103, %s104
      %p108 = pneg %p102
      %p109 = scmp.eq.s32.totalorder %s19, 1
      %p110 = por %p108, %p109
      %p111 = scmp.ne.s32.totalorder %s103, %s106
      %p112 = scmp.eq.s32.totalorder %s19, 0
      %p113 = por %p111, %p112
      %p114 = scmp.ne.s32.totalorder %s103, %s106
      %p115 = scmp.eq.s32.totalorder %s24, 1
      %p116 = por %p114, %p115
      %p117 = scmp.ne.s32.totalorder %s106, %s107
      %p118 = scmp.eq.s32.totalorder %s24, 0
      %p119 = por %p117, %p118
      %p120 = scmp.ne.s32.totalorder %s106, %s107
      %p121 = scmp.eq.s32.totalorder %s25, 1
      %p122 = por %p120, %p121
      %p124 = scmp.ne.s32.totalorder %s107, %s123
      %p125 = scmp.eq.s32.totalorder %s25, 0
      %p126 = por %p124, %p125
      %s127 = sadd.s32 %s26, %s27
      %s128 = sadd.s32 %s45, %s41
      %s129 = ssub.s32 %s127, %s128
      %p130 = scmp.eq.s32.totalorder %s129, 0
      %s132 = sadd.s32 %s131, 1
      %s133 = scalar_select %p130, %s131, %s132
      %p136 = pneg %p130
      %p137 = scmp.eq.s32.totalorder %s19, 1
      %p138 = por %p136, %p137
      %p139 = scmp.ne.s32.totalorder %s131, %s134
      %p140 = scmp.eq.s32.totalorder %s19, 0
      %p141 = por %p139, %p140
      %p142 = scmp.ne.s32.totalorder %s131, %s134
      %p143 = scmp.eq.s32.totalorder %s24, 1
      %p144 = por %p142, %p143
      %p145 = scmp.ne.s32.totalorder %s134, %s135
      %p146 = scmp.eq.s32.totalorder %s24, 0
      %p147 = por %p145, %p146
      %p148 = scmp.ne.s32.totalorder %s134, %s135
      %p149 = scmp.eq.s32.totalorder %s25, 1
      %p150 = por %p148, %p149
      %p152 = scmp.ne.s32.totalorder %s135, %s151
      %p153 = scmp.eq.s32.totalorder %s25, 0
      %p154 = por %p152, %p153
      %p155 = scmp.le.s32.totalorder 1, %s19
      %p156 = scmp.lt.s32.totalorder %s19, 3
      %p157 = pnand %p155, %p156
      %p158 = pneg %p157
      // Predicated region
      $region9: #{tpu_custom_call.1} parent=5 // pred_check
        _
      $region10: #{tpu_custom_call.1} parent=5 // pred_check_branch
        %160 = sbr.rel (%p157) target = $region12
      $region11: #{tpu_custom_call.1} parent=5 // pred_region
        %s161 = ssub.s32 %s19, 1
        // Predicated region
        $region13: #{tpu_custom_call.1} parent=11 // pred_check
          %p162 = pneg %p59
        $region14: #{tpu_custom_call.1} parent=11 // pred_check_branch
          %164 = sbr.rel (%p162) target = $region16
        $region15: #{tpu_custom_call.1} parent=11 // pred_region
          %s166 = ssub.s32 16, 16
          %167 = vsyncadd [#allocation6], %s166
          %170 = dma.hbm_to_smem %s0, 16, [#allocation3], [#allocation6]
        $region16: #{tpu_custom_call.1} parent=11 // pred_fallthru
          _
      $region12: #{tpu_custom_call.1} parent=5 // pred_fallthru
        _
      %p171 = scmp.lt.s32.totalorder %s19, 2
      // Predicated region
      $region17: #{tpu_custom_call.1} parent=5 // pred_check
        %p172 = pneg %p171
      $region18: #{tpu_custom_call.1} parent=5 // pred_check_branch
        %174 = sbr.rel (%p172) target = $region20
      $region19: #{tpu_custom_call.1} parent=5 // pred_region
        // Predicated region
        $region21: #{tpu_custom_call.1} parent=19 // pred_check
          %p175 = pneg %p83
        $region22: #{tpu_custom_call.1} parent=19 // pred_check_branch
          %177 = sbr.rel (%p175) target = $region24
        $region23: #{tpu_custom_call.1} parent=19 // pred_region
          %s178 = sand.u32 %s73, 1
          %s179 = scalar_lea.sflag [#allocation4], %s178
          %s180 = sand.u32 %s73, 1
          %s181 = smul.addr %s180, 6
          %s182 = scalar_lea.vmem [#allocation7], %s181
          %s183 = sadd.s32 %s27, %s28
          %s185 = ssub.s32 96, 96
          %186 = vsyncadd %s179, %s185
          %s187 = smul.addr %s26, 3
          %s188 = sadd.s32 %s183, %s187
          %s189 = smul.addr %s188, 32
          %s190 = scalar_lea.hbm %s1, %s189
          %s191 = sshll.u32 %s182, 4
          %s192 = int_to_ptr.vmem [resolvable:$true] %s191
          %197 = dma.hbm_to_vmem [thread:$0]  %s190, 96, %s192, %s179, 32, 32, 2
        $region24: #{tpu_custom_call.1} parent=19 // pred_fallthru
          _
        // Predicated region
        $region25: #{tpu_custom_call.1} parent=19 // pred_check
          %p198 = pneg %p113
        $region26: #{tpu_custom_call.1} parent=19 // pred_check_branch
          %200 = sbr.rel (%p198) target = $region28
        $region27: #{tpu_custom_call.1} parent=19 // pred_region
          %s201 = sand.u32 %s103, 1
          %s202 = scalar_lea.sflag [#allocation9], %s201
          %s203 = sand.u32 %s103, 1
          %s204 = smul.addr %s203, 6
          %s205 = scalar_lea.vmem [#allocation8], %s204
          %s206 = sadd.s32 %s27, %s28
          %s208 = ssub.s32 96, 96
          %209 = vsyncadd %s202, %s208
          %s210 = smul.addr %s26, 3
          %s211 = sadd.s32 %s206, %s210
          %s212 = smul.addr %s211, 32
          %s213 = scalar_lea.hbm %s2, %s212
          %s214 = sshll.u32 %s205, 4
          %s215 = int_to_ptr.vmem [resolvable:$true] %s214
          %220 = dma.hbm_to_vmem [thread:$0]  %s213, 96, %s215, %s202, 32, 32, 2
        $region28: #{tpu_custom_call.1} parent=19 // pred_fallthru
          _
      $region20: #{tpu_custom_call.1} parent=5 // pred_fallthru
        _
      %p221 = scmp.le.s32.totalorder 1, %s19
      %p222 = scmp.lt.s32.totalorder %s19, 3
      %p223 = pnand %p221, %p222
      %p224 = pneg %p223
      // Predicated region
      $region29: #{tpu_custom_call.1} parent=5 // pred_check
        _
      $region30: #{tpu_custom_call.1} parent=5 // pred_check_branch
        %226 = sbr.rel (%p223) target = $region32
      $region31: #{tpu_custom_call.1} parent=5 // pred_region
        %s227 = ssub.s32 %s19, 1
        // Predicated region
        $region33: #{tpu_custom_call.1} parent=31 // pred_check
          %p228 = pneg %p59
        $region34: #{tpu_custom_call.1} parent=31 // pred_check_branch
          %230 = sbr.rel (%p228) target = $region36
        $region35: #{tpu_custom_call.1} parent=31 // pred_region
          %231 = dma.done [#allocation6], 16
        $region36: #{tpu_custom_call.1} parent=31 // pred_fallthru
          _
        %s232 = sand.u32 %s76, 1
        %s233 = scalar_lea.sflag [#allocation4], %s232
        %s234 = sand.u32 %s76, 1
        %s235 = smul.addr %s234, 6
        %s236 = scalar_lea.vmem [#allocation7], %s235
        // Predicated region
        $region37: #{tpu_custom_call.1} parent=31 // pred_check
          %p237 = pneg %p89
        $region38: #{tpu_custom_call.1} parent=31 // pred_check_branch
          %239 = sbr.rel (%p237) target = $region40
        $region39: #{tpu_custom_call.1} parent=31 // pred_region
          %240 = dma.done %s233, 96
        $region40: #{tpu_custom_call.1} parent=31 // pred_fallthru
          _
        %s241 = sand.u32 %s106, 1
        %s242 = scalar_lea.sflag [#allocation9], %s241
        %s243 = sand.u32 %s106, 1
        %s244 = smul.addr %s243, 6
        %s245 = scalar_lea.vmem [#allocation8], %s244
        // Predicated region
        $region41: #{tpu_custom_call.1} parent=31 // pred_check
          %p246 = pneg %p119
        $region42: #{tpu_custom_call.1} parent=31 // pred_check_branch
          %248 = sbr.rel (%p246) target = $region44
        $region43: #{tpu_custom_call.1} parent=31 // pred_region
          %249 = dma.done %s242, 96
        $region44: #{tpu_custom_call.1} parent=31 // pred_fallthru
          _
        %250 = sfence
        %p251 = pneg %p59
        %p252 = pneg %p56
        %s253 = sand.u32 %s76, 1
        %s254 = scalar_lea.sflag [#allocation4], %s253
        %s255 = sand.u32 %s76, 1
        %s256 = smul.addr %s255, 6
        %s257 = scalar_lea.vmem [#allocation7], %s256
        %p258 = pneg %p89
        %p259 = pneg %p86
        %s260 = sand.u32 %s106, 1
        %s261 = scalar_lea.sflag [#allocation9], %s260
        %s262 = sand.u32 %s106, 1
        %s263 = smul.addr %s262, 6
        %s264 = scalar_lea.vmem [#allocation8], %s263
        %p265 = pneg %p119
        %p266 = pneg %p116
        %p267 = pneg %p147
        %p268 = pneg %p144
        %s269 = sand.u32 %s134, 1
        %s270 = scalar_lea.sflag [#allocation5], %s269
        %s271 = sand.u32 %s134, 1
        %s272 = smul.addr %s271, 2
        %s273 = scalar_lea.vmem [#allocation10], %s272
        %s274 = sadd.s32 %s30, %s31
        %s275 = sadd.s32 %s30, %s31
        %s276 = sadd.s32 %s29, %s30
        %p277 = scmp.eq.s32.totalorder %s31, 0
        // Predicated region
        $region45: #{tpu_custom_call.1} parent=31 // pred_check
          %p278 = pneg %p277
        $region46: #{tpu_custom_call.1} parent=31 // pred_check_branch
          %280 = sbr.rel (%p278) target = $region48
        $region47: #{tpu_custom_call.1} parent=31 // pred_region
          %281 = vst [vmem:[#allocation2] sm:$0x3] 0.0
        $region48: #{tpu_custom_call.1} parent=31 // pred_fallthru
          _
        %s282 = sld [smem:[#allocation3]]
        %s283 = sld [smem:[#allocation3 + $0x1]]
        %s284 = sld [smem:[#allocation3 + $0x2]]
        %s285 = sld [smem:[#allocation3 + $0x3]]
        %s286 = sld [smem:[#allocation3 + $0x4]]
        %s287 = sld [smem:[#allocation3 + $0x5]]
        %s288 = sld [smem:[#allocation3 + $0x6]]
        %s289 = sld [smem:[#allocation3 + $0x7]]
        %s290 = sld [smem:[#allocation3 + $0x8]]
        %s291 = sld [smem:[#allocation3 + $0x9]]
        %v292 = vld [vmem:[%s236] sm:$0x3]
        %s293 = scalar_lea.vmem %s236, 2 [#allocation7]
        %v294 = vld [vmem:[%s293] sm:$0x3]
        %s295 = scalar_lea.vmem %s236, 4 [#allocation7]
        %v296 = vld [vmem:[%s295] sm:$0x3]
        %v297 = vld [vmem:[%s245] sm:$0x3]
        %v298 = vmax.f32 %v297, 0.0
        %v299 = vmin.f32 %v298, 1.0
        %s300 = scalar_lea.vmem %s245, 2 [#allocation8]
        %v301 = vld [vmem:[%s300] sm:$0x3]
        %v302 = vmax.f32 %v301, 0.0
        %v303 = vmin.f32 %v302, 1.0
        %s304 = scalar_lea.vmem %s245, 4 [#allocation8]
        %v305 = vld [vmem:[%s304] sm:$0x3]
        %v306 = vmax.f32 %v305, 0.0
        %v307 = vmin.f32 %v306, 1.0
        %v308 = vstv %s282
        %v309 = vmul.f32 %v308, %v292
        %v310 = vstv %s283
        %v311 = vmul.f32 %v310, %v294
        %v312 = vadd.f32 %v309, %v311
        %v313 = vstv %s285
        %v314 = vmul.f32 %v313, %v296
        %v315 = vadd.f32 %v312, %v314
        %v316 = vstv %s288
        %v317 = vadd.f32 %v315, %v316
        %v318 = vstv %s284
        %v319 = vmul.f32 %v318, %v294
        %v320 = vstv %s286
        %v321 = vmul.f32 %v320, %v296
        %v322 = vadd.f32 %v319, %v321
        %v323 = vstv %s289
        %v324 = vadd.f32 %v322, %v323
        %v325 = vstv %s287
        %v326 = vmul.f32 %v325, %v296
        %v327 = vstv %s290
        %v328 = vadd.f32 %v326, %v327
        %v329 = vmul.f32 %v308, %v299
        %v330 = vmul.f32 %v310, %v303
        %v331 = vadd.f32 %v329, %v330
        %v332 = vmul.f32 %v313, %v307
        %v333 = vadd.f32 %v331, %v332
        %v334 = vadd.f32 %v333, %v316
        %v335 = vmul.f32 %v318, %v303
        %v336 = vmul.f32 %v320, %v307
        %v337 = vadd.f32 %v335, %v336
        %v338 = vadd.f32 %v337, %v323
        %v339 = vmul.f32 %v325, %v307
        %v340 = vadd.f32 %v339, %v327
        %v341 = vmul.f32 %v317, %v334
        %v342 = vmul.f32 %v324, %v338
        %v343 = vadd.f32 %v341, %v342
        %v344 = vmul.f32 %v328, %v340
        %v345 = vadd.f32 %v343, %v344
        %v346 = vstv %s291
        %v347 = vadd.f32 %v345, %v346
        %v348 = vmul.f32 %v317, %v317
        %v349 = vmul.f32 %v324, %v324
        %v350 = vadd.f32 %v348, %v349
        %v351 = vmul.f32 %v328, %v328
        %v352 = vadd.f32 %v350, %v351
        %v353 = vadd.f32 %v352, %v346
        %v354 = vmul.f32 %v334, %v334
        %v355 = vmul.f32 %v338, %v338
        %v356 = vadd.f32 %v354, %v355
        %v357 = vmul.f32 %v340, %v340
        %v358 = vadd.f32 %v356, %v357
        %v359 = vadd.f32 %v358, %v346
        %v360 = vmax.f32 %v353, 1e-16
        %v361 = vrsqrt.pop %v360
        %v362 = vmul.f32 %v347, %v361
        %v363 = vmax.f32 %v359, 1e-16
        %v364 = vrsqrt.pop %v363
        %v365 = vmul.f32 %v362, %v364
        %v366 = vld [vmem:[#allocation2] sm:$0x3]
        %v367 = vadd.f32 %v366, %v365
        %368 = vst [vmem:[#allocation2] sm:$0x3] %v367
        // Predicated region
        $region49: #{tpu_custom_call.1} parent=31 // pred_check
          %p369 = pneg %p277
        $region50: #{tpu_custom_call.1} parent=31 // pred_check_branch
          %371 = sbr.rel (%p369) target = $region52
        $region51: #{tpu_custom_call.1} parent=31 // pred_region
          %v372 = vld [vmem:[#allocation2] sm:$0x3]
          %v373 = vadd.f32 %v372, 0.0
          %374 = vst [vmem:[%s273] sm:$0x3] %v373
        $region52: #{tpu_custom_call.1} parent=31 // pred_fallthru
          _
        %s375 = sand.u32 %s134, 1
        %s376 = scalar_lea.sflag [#allocation5], %s375
        %s377 = sand.u32 %s134, 1
        %s378 = smul.addr %s377, 2
        %s379 = scalar_lea.vmem [#allocation10], %s378
        // Predicated region
        $region53: #{tpu_custom_call.1} parent=31 // pred_check
          %p380 = pneg %p144
        $region54: #{tpu_custom_call.1} parent=31 // pred_check_branch
          %382 = sbr.rel (%p380) target = $region56
        $region55: #{tpu_custom_call.1} parent=31 // pred_region
          %s383 = sadd.s32 %s29, %s30
          %s385 = ssub.s32 32, 32
          %386 = vsyncadd %s376, %s385
          %s387 = smul.addr %s383, 32
          %s388 = scalar_lea.hbm %s3, %s387
          %s390 = sshll.u32 %s379, 4
          %s391 = int_to_ptr.vmem [resolvable:$true] %s390
          %393 = dma.vmem_to_hbm [thread:$0]  %s391, 32, %s388, %s376
        $region56: #{tpu_custom_call.1} parent=31 // pred_fallthru
          _
      $region32: #{tpu_custom_call.1} parent=5 // pred_fallthru
        _
      %p394 = scmp.le.s32.totalorder 2, %s19
      // Predicated region
      $region57: #{tpu_custom_call.1} parent=5 // pred_check
        %p395 = pneg %p394
      $region58: #{tpu_custom_call.1} parent=5 // pred_check_branch
        %397 = sbr.rel (%p395) target = $region60
      $region59: #{tpu_custom_call.1} parent=5 // pred_region
        %s398 = ssub.s32 %s19, 2
        // Predicated region
        $region61: #{tpu_custom_call.1} parent=59 // pred_check
          %p399 = pneg %p150
        $region62: #{tpu_custom_call.1} parent=59 // pred_check_branch
          %401 = sbr.rel (%p399) target = $region64
        $region63: #{tpu_custom_call.1} parent=59 // pred_region
          %s402 = sand.u32 %s135, 1
          %s403 = scalar_lea.sflag [#allocation5], %s402
          %s404 = sand.u32 %s135, 1
          %s405 = smul.addr %s404, 2
          %s406 = scalar_lea.vmem [#allocation10], %s405
          %407 = dma.done %s403, 32
        $region64: #{tpu_custom_call.1} parent=59 // pred_fallthru
          _
      $region60: #{tpu_custom_call.1} parent=5 // pred_fallthru
        _
    $region6: #{tpu_custom_call.1} parent=1 // loop_footer
      %s23 = sadd.s32 1, %s19
    $region7: #{tpu_custom_call.1} parent=1 // loop_footer_branch
      %18 = sbr.rel target = $region3
    $region8: #{tpu_custom_call.1} parent=1 // loop_exit
      _
    %408 = vsyncpa [#allocation4], 1
    %s409 = scalar_lea.sflag [#allocation4], 1
    %410 = vsyncpa %s409, 1
    %411 = vsyncpa [#allocation9], 1
    %s412 = scalar_lea.sflag [#allocation9], 1
    %413 = vsyncpa %s412, 1
    %414 = vsyncpa [#allocation5], 1
    %s415 = scalar_lea.sflag [#allocation5], 1
    %416 = vsyncpa %s415, 1
    %417 = vsyncpa [#allocation6], 1
    %s418 = scalar_lea.sflag [#allocation6], 1
    %419 = vsyncpa %s418, 1

</llo_original>
